<compile_context>
chip_gen: v7x
topology: tpu7x:2x2x1
jax: 0.10.0
libtpu: 0.0.40
codegen_flags: <defaults>
</compile_context>

<pallas_src>
import functools

import jax
import jax.numpy as jnp
from jax.experimental import pallas as pl
from jax.experimental.pallas import tpu as pltpu


def _round_up(x, m):
    return ((x + m - 1) // m) * m


# ---------------------------------------------------------------------------
# Fused kernel: one grid step == one LSTM layer
# ---------------------------------------------------------------------------
def _stacked_lstm_kernel(x0_ref, h0_ref, c0_ref, w_ref, b_ref,
                         h1_ref, c1_ref, xh_scr, *, k_in, hp):
    layer = pl.program_id(0)

    # Layer 0: load the (padded) external input into the resident [x | h] slab.
    @pl.when(layer == 0)
    def _():
        xh_scr[:, :k_in] = x0_ref[...]

    # This layer's incoming hidden state occupies the last Hp lanes of the slab.
    xh_scr[:, k_in:] = h0_ref[0]

    # Single fused MXU pass: [x | h] @ [W_ih^T ; W_hh^T] + (b_ih + b_hh).
    gates = (
        jnp.dot(xh_scr[...], w_ref[0], preferred_element_type=jnp.float32)
        + b_ref[0].astype(jnp.float32)
    )

    i_g = jax.nn.sigmoid(gates[:, 0 * hp:1 * hp])
    f_g = jax.nn.sigmoid(gates[:, 1 * hp:2 * hp])
    g_g = jnp.tanh(gates[:, 2 * hp:3 * hp])
    o_g = jax.nn.sigmoid(gates[:, 3 * hp:4 * hp])

    c_new = f_g * c0_ref[0].astype(jnp.float32) + i_g * g_g
    h_new = o_g * jnp.tanh(c_new)

    h1_ref[0] = h_new.astype(h1_ref.dtype)
    c1_ref[0] = c_new.astype(c1_ref.dtype)

    # Carry h to the next layer's input slot (dropout p=0 / eval == identity).
    @pl.when(layer + 1 < pl.num_programs(0))
    def _():
        xh_scr[:, :hp] = h_new.astype(xh_scr.dtype)


# ---------------------------------------------------------------------------
# One-time parameter packing (transpose + bias fusion + padding + stacking)
# ---------------------------------------------------------------------------
def pack_params(params, input_size, rnn_size, dtype=jnp.float32):
    """params: list of (w_ih, w_hh, b_ih, b_hh) with nn.LSTMCell shapes.
    Returns stacked, padded, pre-transposed weights for the fused kernel."""
    num_layers = len(params)
    H = rnn_size
    Hp = _round_up(H, 128)                       # lane-padded hidden width
    Din_p = _round_up(max(input_size, H), 128)   # width of the "x" section
    K = Din_p + Hp                               # fused contraction dim
    N = 4 * Hp                                   # lane-padded gate width

    W = jnp.zeros((num_layers, K, N), dtype)
    Bv = jnp.zeros((num_layers, 1, N), dtype)
    for l, (w_ih, w_hh, b_ih, b_hh) in enumerate(params):
        d_in = w_ih.shape[1]
        wih_t = jnp.transpose(w_ih).astype(dtype)   # (d_in, 4H)
        whh_t = jnp.transpose(w_hh).astype(dtype)   # (H, 4H)
        bsum = (b_ih + b_hh).astype(dtype)          # (4H,)
        for g in range(4):
            W = W.at[l, :d_in, g * Hp:g * Hp + H].set(
                wih_t[:, g * H:(g + 1) * H])
            W = W.at[l, Din_p:Din_p + H, g * Hp:g * Hp + H].set(
                whh_t[:, g * H:(g + 1) * H])
            Bv = Bv.at[l, 0, g * Hp:g * Hp + H].set(bsum[g * H:(g + 1) * H])

    return {"W": W, "b": Bv, "H": H, "Hp": Hp, "Din_p": Din_p, "K": K,
            "input_size": input_size, "num_layers": num_layers}


# ---------------------------------------------------------------------------
# StackedLSTM forward
# ---------------------------------------------------------------------------
def stacked_lstm_forward(packed, inputs, hidden):
    """inputs: (B, D_in); hidden: (h_0, c_0), each (L, B, H).
    Returns (out, (h_1, c_1)) matching the PyTorch module."""
    h0, c0 = hidden
    L = packed["num_layers"]
    H, Hp, Din_p, K = packed["H"], packed["Hp"], packed["Din_p"], packed["K"]
    B, D = inputs.shape
    Bp = _round_up(B, 8)
    dtype = inputs.dtype

    # Pad to TPU-native tiles (pad rows/lanes are inert and sliced off below).
    x_p = jnp.zeros((Bp, Din_p), dtype).at[:B, :D].set(inputs)
    h0_p = jnp.zeros((L, Bp, Hp), dtype).at[:, :B, :H].set(h0)
    c0_p = jnp.zeros((L, Bp, Hp), dtype).at[:, :B, :H].set(c0)

    kernel = functools.partial(_stacked_lstm_kernel, k_in=Din_p, hp=Hp)

    h1_p, c1_p = pl.pallas_call(
        kernel,
        out_shape=(
            jax.ShapeDtypeStruct((L, Bp, Hp), dtype),
            jax.ShapeDtypeStruct((L, Bp, Hp), dtype),
        ),
        grid_spec=pltpu.PrefetchScalarGridSpec(
            num_scalar_prefetch=0,
            grid=(L,),
            in_specs=[
                pl.BlockSpec((Bp, Din_p), lambda l: (0, 0)),        # x (layer 0)
                pl.BlockSpec((1, Bp, Hp), lambda l: (l, 0, 0)),     # h_0[l]
                pl.BlockSpec((1, Bp, Hp), lambda l: (l, 0, 0)),     # c_0[l]
                pl.BlockSpec((1, K, 4 * Hp), lambda l: (l, 0, 0)),  # W[l] (streamed)
                pl.BlockSpec((1, 1, 4 * Hp), lambda l: (l, 0, 0)),  # b[l]
            ],
            out_specs=(
                pl.BlockSpec((1, Bp, Hp), lambda l: (l, 0, 0)),     # h_1[l]
                pl.BlockSpec((1, Bp, Hp), lambda l: (l, 0, 0)),     # c_1[l]
            ),
            scratch_shapes=[pltpu.VMEM((Bp, K), dtype)],            # [x | h] slab
        ),
        compiler_params=pltpu.CompilerParams(
            dimension_semantics=("arbitrary",)),                    # layers are sequential
    )(x_p, h0_p, c0_p, packed["W"], packed["b"])

    h1 = h1_p[:, :B, :H]
    c1 = c1_p[:, :B, :H]
    out = h1[-1]  # final layer output after identity dropout
    return out, (h1, c1)


def init_params(key, num_layers, input_size, rnn_size, dtype=jnp.float32):
    """nn.LSTMCell-shaped params, uniform(-1/sqrt(H), 1/sqrt(H))."""
    params = []
    bound = 1.0 / (rnn_size ** 0.5)
    d_in = input_size
    for _ in range(num_layers):
        key, k1, k2, k3, k4 = jax.random.split(key, 5)
        w_ih = jax.random.uniform(k1, (4 * rnn_size, d_in), dtype, -bound, bound)
        w_hh = jax.random.uniform(k2, (4 * rnn_size, rnn_size), dtype, -bound, bound)
        b_ih = jax.random.uniform(k3, (4 * rnn_size,), dtype, -bound, bound)
        b_hh = jax.random.uniform(k4, (4 * rnn_size,), dtype, -bound, bound)
        params.append((w_ih, w_hh, b_ih, b_hh))
        d_in = rnn_size
    return params


# ---------------------------------------------------------------------------
# Pure-JAX reference (correctness check)
# ---------------------------------------------------------------------------
def _lstm_cell_ref(x, h, c, w_ih, w_hh, b_ih, b_hh):
    gates = x @ w_ih.T + b_ih + h @ w_hh.T + b_hh
    H = h.shape[1]
    i = jax.nn.sigmoid(gates[:, :H])
    f = jax.nn.sigmoid(gates[:, H:2 * H])
    g = jnp.tanh(gates[:, 2 * H:3 * H])
    o = jax.nn.sigmoid(gates[:, 3 * H:])
    c_new = f * c + i * g
    h_new = o * jnp.tanh(c_new)
    return h_new, c_new


def _stacked_ref(params, inputs, hidden):
    h_0, c_0 = hidden
    h_1, c_1 = [], []
    x = inputs
    for i, (w_ih, w_hh, b_ih, b_hh) in enumerate(params):
        h_i, c_i = _lstm_cell_ref(x, h_0[i], c_0[i], w_ih, w_hh, b_ih, b_hh)
        x = h_i
        h_1.append(h_i)
        c_1.append(c_i)
    return x, (jnp.stack(h_1), jnp.stack(c_1))


if __name__ == "__main__":
    num_layers = 2
    input_size = 32
    rnn_size = 32
    batch = 2

    key = jax.random.PRNGKey(0)
    kp, kx, kh, kc = jax.random.split(key, 4)

    params = init_params(kp, num_layers, input_size, rnn_size)
    packed = pack_params(params, input_size, rnn_size)

    x = jax.random.normal(kx, (batch, input_size), jnp.float32)
    h_0 = jax.random.normal(kh, (num_layers, batch, rnn_size), jnp.float32)
    c_0 = jax.random.normal(kc, (num_layers, batch, rnn_size), jnp.float32)

    out, (h_1, c_1) = stacked_lstm_forward(packed, x, (h_0, c_0))
    out = jax.block_until_ready(out)
    h_1 = jax.block_until_ready(h_1)
    c_1 = jax.block_until_ready(c_1)

    # sanity check vs pure-JAX reference
    out_r, (h_r, c_r) = _stacked_ref(params, x, (h_0, c_0))
    assert jnp.allclose(out, out_r, atol=1e-4, rtol=1e-4)
    assert jnp.allclose(h_1, h_r, atol=1e-4, rtol=1e-4)
    assert jnp.allclose(c_1, c_r, atol=1e-4, rtol=1e-4)

    print("KERNEL_OK")
</pallas_src>

<mosaic_0001>
module attributes {stable_mosaic.version = 11 : i64} {
  func.func @_stacked_lstm_kernel(%arg0: i32, %arg1: memref<8x128xf32, #tpu.memory_space<vmem>>, %arg2: memref<1x8x128xf32, #tpu.memory_space<vmem>>, %arg3: memref<1x8x128xf32, #tpu.memory_space<vmem>>, %arg4: memref<1x256x512xf32, #tpu.memory_space<vmem>>, %arg5: memref<1x1x512xf32, #tpu.memory_space<vmem>>, %arg6: memref<1x8x128xf32, #tpu.memory_space<vmem>>, %arg7: memref<1x8x128xf32, #tpu.memory_space<vmem>>, %arg8: memref<8x256xf32, #tpu.memory_space<vmem>>) attributes {dimension_semantics = [#tpu.dimension_semantics<arbitrary>], iteration_bounds = array<i64: 2>, scalar_prefetch = 0 : i64, scratch_operands = 1 : i64, tpu.core_type = #tpu.core_type<tc>, window_params = [{pipeline_mode = #tpu.pipeline_mode<synchronous>, transform_indices = @transform_0, window_bounds = array<i64: 8, 128>}, {transform_indices = @transform_1, window_bounds = array<i64: 1, 8, 128>}, {transform_indices = @transform_2, window_bounds = array<i64: 1, 8, 128>}, {transform_indices = @transform_3, window_bounds = array<i64: 1, 256, 512>}, {transform_indices = @transform_4, window_bounds = array<i64: 1, 1, 512>}, {transform_indices = @transform_5, window_bounds = array<i64: 1, 8, 128>}, {transform_indices = @transform_6, window_bounds = array<i64: 1, 8, 128>}]} {
    %c0_i32 = arith.constant 0 : i32
    %0 = arith.cmpi eq, %arg0, %c0_i32 : i32
    %1 = arith.extui %0 : i1 to i32
    %c0_i32_0 = arith.constant 0 : i32
    %2 = arith.cmpi ne, %1, %c0_i32_0 : i32
    scf.if %2 {
      %c0_25 = arith.constant 0 : index
      %c0_26 = arith.constant 0 : index
      %51 = vector.load %arg1[%c0_25, %c0_26] : memref<8x128xf32, #tpu.memory_space<vmem>>, vector<8x128xf32>
      %c0_27 = arith.constant 0 : index
      %c0_28 = arith.constant 0 : index
      %52 = vector.load %arg8[%c0_27, %c0_28] : memref<8x256xf32, #tpu.memory_space<vmem>>, vector<8x128xf32>
      tpu.vector_store %arg8[%c0_27, %c0_28], %51 {strides = array<i32>} : memref<8x256xf32, #tpu.memory_space<vmem>>, vector<8x128xf32>,
    } else {
    }
    %c0 = arith.constant 0 : index
    %c0_1 = arith.constant 0 : index
    %c0_2 = arith.constant 0 : index
    %3 = vector.load %arg2[%c0, %c0_1, %c0_2] : memref<1x8x128xf32, #tpu.memory_space<vmem>>, vector<1x8x128xf32>
    %4 = vector.shape_cast %3 : vector<1x8x128xf32> to vector<8x128xf32>
    %c0_3 = arith.constant 0 : index
    %c128 = arith.constant 128 : index
    %5 = vector.load %arg8[%c0_3, %c128] : memref<8x256xf32, #tpu.memory_space<vmem>>, vector<8x128xf32>
    tpu.vector_store %arg8[%c0_3, %c128], %4 {strides = array<i32>} : memref<8x256xf32, #tpu.memory_space<vmem>>, vector<8x128xf32>,
    %c0_4 = arith.constant 0 : index
    %c0_5 = arith.constant 0 : index
    %6 = vector.load %arg8[%c0_4, %c0_5] : memref<8x256xf32, #tpu.memory_space<vmem>>, vector<8x256xf32>
    %c0_6 = arith.constant 0 : index
    %c0_7 = arith.constant 0 : index
    %c0_8 = arith.constant 0 : index
    %7 = vector.load %arg4[%c0_6, %c0_7, %c0_8] : memref<1x256x512xf32, #tpu.memory_space<vmem>>, vector<1x256x512xf32>
    %8 = vector.shape_cast %7 : vector<1x256x512xf32> to vector<256x512xf32>
    %cst = arith.constant dense<0.000000e+00> : vector<8x512xf32>
    %9 = tpu.matmul %6, %8, %cst {dimension_numbers = #tpu.dot_dimension_numbers<[1], [0], [0], [1], [0, 0, 1, 1], [], []>} : vector<8x256xf32>, vector<256x512xf32>, vector<8x512xf32> -> vector<8x512xf32>
    %c0_9 = arith.constant 0 : index
    %c0_10 = arith.constant 0 : index
    %c0_11 = arith.constant 0 : index
    %10 = vector.load %arg5[%c0_9, %c0_10, %c0_11] : memref<1x1x512xf32, #tpu.memory_space<vmem>>, vector<1x1x512xf32>
    %11 = vector.shape_cast %10 : vector<1x1x512xf32> to vector<1x512xf32>
    %12 = vector.broadcast %11 : vector<1x512xf32> to vector<8x512xf32>
    %13 = arith.addf %9, %12 : vector<8x512xf32>
    %14 = vector.extract_strided_slice %13 {offsets = [0, 0], sizes = [8, 128], strides = [1, 1]} : vector<8x512xf32> to vector<8x128xf32>
    %15 = arith.negf %14 : vector<8x128xf32>
    %16 = math.exp %15 : vector<8x128xf32>
    %cst_12 = arith.constant 1.000000e+00 : f32
    %17 = vector.broadcast %cst_12 : f32 to vector<8x128xf32>
    %18 = arith.addf %17, %16 : vector<8x128xf32>
    %19 = arith.divf %17, %18 : vector<8x128xf32>
    %20 = vector.extract_strided_slice %13 {offsets = [0, 128], sizes = [8, 128], strides = [1, 1]} : vector<8x512xf32> to vector<8x128xf32>
    %21 = arith.negf %20 : vector<8x128xf32>
    %22 = math.exp %21 : vector<8x128xf32>
    %cst_13 = arith.constant 1.000000e+00 : f32
    %23 = vector.broadcast %cst_13 : f32 to vector<8x128xf32>
    %24 = arith.addf %23, %22 : vector<8x128xf32>
    %25 = arith.divf %23, %24 : vector<8x128xf32>
    %26 = vector.extract_strided_slice %13 {offsets = [0, 256], sizes = [8, 128], strides = [1, 1]} : vector<8x512xf32> to vector<8x128xf32>
    %27 = math.tanh %26 : vector<8x128xf32>
    %28 = vector.extract_strided_slice %13 {offsets = [0, 384], sizes = [8, 128], strides = [1, 1]} : vector<8x512xf32> to vector<8x128xf32>
    %29 = arith.negf %28 : vector<8x128xf32>
    %30 = math.exp %29 : vector<8x128xf32>
    %cst_14 = arith.constant 1.000000e+00 : f32
    %31 = vector.broadcast %cst_14 : f32 to vector<8x128xf32>
    %32 = arith.addf %31, %30 : vector<8x128xf32>
    %33 = arith.divf %31, %32 : vector<8x128xf32>
    %c0_15 = arith.constant 0 : index
    %c0_16 = arith.constant 0 : index
    %c0_17 = arith.constant 0 : index
    %34 = vector.load %arg3[%c0_15, %c0_16, %c0_17] : memref<1x8x128xf32, #tpu.memory_space<vmem>>, vector<1x8x128xf32>
    %35 = vector.shape_cast %34 : vector<1x8x128xf32> to vector<8x128xf32>
    %36 = arith.mulf %25, %35 : vector<8x128xf32>
    %37 = arith.mulf %19, %27 : vector<8x128xf32>
    %38 = arith.addf %36, %37 : vector<8x128xf32>
    %39 = math.tanh %38 : vector<8x128xf32>
    %40 = arith.mulf %33, %39 : vector<8x128xf32>
    %c0_18 = arith.constant 0 : index
    %c0_19 = arith.constant 0 : index
    %c0_20 = arith.constant 0 : index
    %41 = vector.load %arg6[%c0_18, %c0_19, %c0_20] : memref<1x8x128xf32, #tpu.memory_space<vmem>>, vector<1x8x128xf32>
    %42 = vector.shape_cast %41 : vector<1x8x128xf32> to vector<8x128xf32>
    %43 = vector.shape_cast %40 : vector<8x128xf32> to vector<1x8x128xf32>
    tpu.vector_store %arg6[%c0_18, %c0_19, %c0_20], %43 {strides = array<i32>} : memref<1x8x128xf32, #tpu.memory_space<vmem>>, vector<1x8x128xf32>,
    %c0_21 = arith.constant 0 : index
    %c0_22 = arith.constant 0 : index
    %c0_23 = arith.constant 0 : index
    %44 = vector.load %arg7[%c0_21, %c0_22, %c0_23] : memref<1x8x128xf32, #tpu.memory_space<vmem>>, vector<1x8x128xf32>
    %45 = vector.shape_cast %44 : vector<1x8x128xf32> to vector<8x128xf32>
    %46 = vector.shape_cast %38 : vector<8x128xf32> to vector<1x8x128xf32>
    tpu.vector_store %arg7[%c0_21, %c0_22, %c0_23], %46 {strides = array<i32>} : memref<1x8x128xf32, #tpu.memory_space<vmem>>, vector<1x8x128xf32>,
    %c1_i32 = arith.constant 1 : i32
    %47 = arith.addi %arg0, %c1_i32 : i32
    %c2_i32 = arith.constant 2 : i32
    %48 = arith.cmpi slt, %47, %c2_i32 : i32
    %49 = arith.extui %48 : i1 to i32
    %c0_i32_24 = arith.constant 0 : i32
    %50 = arith.cmpi ne, %49, %c0_i32_24 : i32
    scf.if %50 {
      %c0_25 = arith.constant 0 : index
      %c0_26 = arith.constant 0 : index
      %51 = vector.load %arg8[%c0_25, %c0_26] : memref<8x256xf32, #tpu.memory_space<vmem>>, vector<8x128xf32>
      tpu.vector_store %arg8[%c0_25, %c0_26], %40 {strides = array<i32>} : memref<8x256xf32, #tpu.memory_space<vmem>>, vector<8x128xf32>,
    } else {
    }
    return
  }
  func.func @transform_0(%arg0: i32) -> (i32, i32) {
    %c0_i32 = arith.constant 0 : i32
    %c0_i32_0 = arith.constant 0 : i32
    %c0_i32_1 = arith.constant 0 : i32
    return %c0_i32, %c0_i32_0 : i32, i32
  }
  func.func @transform_1(%arg0: i32) -> (i32, i32, i32) {
    %c0_i32 = arith.constant 0 : i32
    %c0_i32_0 = arith.constant 0 : i32
    %c0_i32_1 = arith.constant 0 : i32
    return %arg0, %c0_i32, %c0_i32_0 : i32, i32, i32
  }
  func.func @transform_2(%arg0: i32) -> (i32, i32, i32) {
    %c0_i32 = arith.constant 0 : i32
    %c0_i32_0 = arith.constant 0 : i32
    %c0_i32_1 = arith.constant 0 : i32
    return %arg0, %c0_i32, %c0_i32_0 : i32, i32, i32
  }
  func.func @transform_3(%arg0: i32) -> (i32, i32, i32) {
    %c0_i32 = arith.constant 0 : i32
    %c0_i32_0 = arith.constant 0 : i32
    %c0_i32_1 = arith.constant 0 : i32
    return %arg0, %c0_i32, %c0_i32_0 : i32, i32, i32
  }
  func.func @transform_4(%arg0: i32) -> (i32, i32, i32) {
    %c0_i32 = arith.constant 0 : i32
    %c0_i32_0 = arith.constant 0 : i32
    %c0_i32_1 = arith.constant 0 : i32
    return %arg0, %c0_i32, %c0_i32_0 : i32, i32, i32
  }
  func.func @transform_5(%arg0: i32) -> (i32, i32, i32) {
    %c0_i32 = arith.constant 0 : i32
    %c0_i32_0 = arith.constant 0 : i32
    %c0_i32_1 = arith.constant 0 : i32
    return %arg0, %c0_i32, %c0_i32_0 : i32, i32, i32
  }
  func.func @transform_6(%arg0: i32) -> (i32, i32, i32) {
    %c0_i32 = arith.constant 0 : i32
    %c0_i32_0 = arith.constant 0 : i32
    %c0_i32_1 = arith.constant 0 : i32
    return %arg0, %c0_i32, %c0_i32_0 : i32, i32, i32
  }
}

</mosaic_0001>

<llo_original>
// kernel: tpu_custom_call.1
$region0: #{tpu_custom_call.1}
  #allocation0 [shape = 'u32[]', space=smem, size = 0x4, offset = 0x4, fixed_abs, tag = 'smem constant byte address 0x4 - core index']
  #allocation1 [shape = 'u32[144,128]{1,0:T(1,128)}', space=vmem, size = 0x12000, scoped, tag = 'internal scratch']
  #allocation2 [shape = 'f32[8,256]{1,0:T(8,128)}', space=vmem, size = 0x2000, scoped, tag = 'scratch operand']
  %s0 = inlined_call_operand.hbm [shape: f32[8,128], index: 0, kind: input, shape index: {}]
  %s1 = inlined_call_operand.hbm [shape: f32[2,8,128], index: 1, kind: input, shape index: {}]
  %s2 = inlined_call_operand.hbm [shape: f32[2,8,128], index: 2, kind: input, shape index: {}]
  %s3 = inlined_call_operand.hbm [shape: f32[2,256,512], index: 3, kind: input, shape index: {}]
  %s4 = inlined_call_operand.vmem [shape: f32[2,1,512], index: 4, kind: input, shape index: {}]
  %s5 = inlined_call_operand.hbm [shape: f32[2,8,128], index: 5, kind: output, shape index: {0}]
  %s6 = inlined_call_operand.hbm [shape: f32[2,8,128], index: 6, kind: output, shape index: {1}]
  %7 = xla_tuple %s5, %s6
  %s8 = sld [smem:[#allocation0]]
  $region85: #{tpu_custom_call.1} parent=0
    _
  %s10 = ssub.s32 1, %s8
  %s11 = scalar_select 0, %s10, %s8
  $region1: #{tpu_custom_call.1} parent=0
    #allocation3 [shape = 'u8[4096]{0}', space=vmem, size = 0x1000, scoped, tag = 'input window, operand 0, single buffered']
    #allocation4 [shape = 's32[2]{0}', space=sflag, size = 0x8, scoped, tag = 'scoped memory for tpu_custom_call.1']
    #allocation5 [shape = 's32[2]{0}', space=sflag, size = 0x8, scoped, tag = 'scoped memory for tpu_custom_call.1']
    #allocation6 [shape = 'u8[8192]{0}', space=vmem, size = 0x2000, scoped, tag = 'input window, operand 1']
    #allocation7 [shape = 's32[2]{0}', space=sflag, size = 0x8, scoped, tag = 'scoped memory for tpu_custom_call.1']
    #allocation8 [shape = 'u8[8192]{0}', space=vmem, size = 0x2000, scoped, tag = 'input window, operand 2']
    #allocation9 [shape = 'u8[1048576]{0}', space=vmem, size = 0x100000, scoped, tag = 'input window, operand 3']
    #allocation10 [shape = 's32[2]{0}', space=sflag, size = 0x8, scoped, tag = 'scoped memory for tpu_custom_call.1']
    #allocation11 [shape = 'u8[8192]{0}', space=vmem, size = 0x2000, scoped, tag = 'output window, operand 0']
    #allocation12 [shape = 'u8[8192]{0}', space=vmem, size = 0x2000, scoped, tag = 'output window, operand 1']
    #allocation13 [shape = 's32[2]{0}', space=sflag, size = 0x8, scoped, tag = 'scoped memory for tpu_custom_call.1']
    %12 = vsyncpa [#allocation4], 0
    %13 = vsyncpa [#allocation7], 0
    %s14 = scalar_lea.sflag [#allocation7], 1
    %15 = vsyncpa %s14, 0
    %16 = vsyncpa [#allocation10], 0
    %s17 = scalar_lea.sflag [#allocation10], 1
    %18 = vsyncpa %s17, 0
    %19 = vsyncpa [#allocation5], 0
    %s20 = scalar_lea.sflag [#allocation5], 1
    %21 = vsyncpa %s20, 0
    %22 = vsyncpa [#allocation13], 0
    %s23 = scalar_lea.sflag [#allocation13], 1
    %24 = vsyncpa %s23, 0
    loop: start=0, step=1, limit=4
    $region2: #{tpu_custom_call.1} parent=1 // loop_pre_header
      _
    $region3: #{tpu_custom_call.1} parent=1 // loop_header
      %s26 = sphi 0, %s30
      %p27 = scmp.ge.s32.totalorder %s26, 4
      %s34 = sphi 0, %s34
      %s36 = sphi 0, %s34
      %s37 = sphi 0, %s36
      %s51 = sphi 0, %s37
      %s57 = sphi 0, %s59
      %s60 = sphi 0, %s57
      %s61 = sphi 0, %s60
      %s77 = sphi 0, %s61
      %s83 = sphi 0, %s85
      %s86 = sphi 0, %s83
      %s87 = sphi 0, %s86
      %s103 = sphi 0, %s87
      %s109 = sphi 0, %s111
      %s112 = sphi 0, %s109
      %s113 = sphi 0, %s112
      %s129 = sphi 0, %s113
      %s135 = sphi 0, %s137
      %s138 = sphi 0, %s135
      %s139 = sphi 0, %s138
      %s155 = sphi 0, %s139
      %s161 = sphi 0, %s163
      %s164 = sphi 0, %s161
      %s165 = sphi 0, %s164
      %s181 = sphi 0, %s165
      %s187 = sphi 0, %s189
      %s190 = sphi 0, %s187
      %s191 = sphi 0, %s190
      %s207 = sphi 0, %s191
    $region4: #{tpu_custom_call.1} parent=1 // loop_header_branch
      %29 = sbr.rel (%p27) target = $region8
    $region5: #{tpu_custom_call.1} parent=1 // loop_body
      %s31 = ssub.s32 %s26, 1
      %s32 = ssub.s32 %s26, 2
      %s33 = sadd.s32 %s26, 1
      %s35 = sadd.s32 %s34, 1
      %p38 = scmp.eq.s32.totalorder %s26, 1
      %p39 = scmp.ne.s32.totalorder %s34, %s36
      %p40 = scmp.eq.s32.totalorder %s26, 0
      %p41 = por %p39, %p40
      %p42 = scmp.ne.s32.totalorder %s34, %s36
      %p43 = scmp.eq.s32.totalorder %s31, 1
      %p44 = por %p42, %p43
      %p45 = scmp.ne.s32.totalorder %s36, %s37
      %p46 = scmp.eq.s32.totalorder %s31, 0
      %p47 = por %p45, %p46
      %p48 = scmp.ne.s32.totalorder %s36, %s37
      %p49 = scmp.eq.s32.totalorder %s32, 1
      %p50 = por %p48, %p49
      %p52 = scmp.ne.s32.totalorder %s37, %s51
      %p53 = scmp.eq.s32.totalorder %s32, 0
      %p54 = por %p52, %p53
      %s55 = ssub.s32 %s26, %s33
      %p56 = scmp.eq.s32.totalorder %s55, 0
      %s58 = sadd.s32 %s57, 1
      %s59 = scalar_select %p56, %s57, %s58
      %p62 = pneg %p56
      %p63 = scmp.eq.s32.totalorder %s26, 1
      %p64 = por %p62, %p63
      %p65 = scmp.ne.s32.totalorder %s57, %s60
      %p66 = scmp.eq.s32.totalorder %s26, 0
      %p67 = por %p65, %p66
      %p68 = scmp.ne.s32.totalorder %s57, %s60
      %p69 = scmp.eq.s32.totalorder %s31, 1
      %p70 = por %p68, %p69
      %p71 = scmp.ne.s32.totalorder %s60, %s61
      %p72 = scmp.eq.s32.totalorder %s31, 0
      %p73 = por %p71, %p72
      %p74 = scmp.ne.s32.totalorder %s60, %s61
      %p75 = scmp.eq.s32.totalorder %s32, 1
      %p76 = por %p74, %p75
      %p78 = scmp.ne.s32.totalorder %s61, %s77
      %p79 = scmp.eq.s32.totalorder %s32, 0
      %p80 = por %p78, %p79
      %s81 = ssub.s32 %s26, %s33
      %p82 = scmp.eq.s32.totalorder %s81, 0
      %s84 = sadd.s32 %s83, 1
      %s85 = scalar_select %p82, %s83, %s84
      %p88 = pneg %p82
      %p89 = scmp.eq.s32.totalorder %s26, 1
      %p90 = por %p88, %p89
      %p91 = scmp.ne.s32.totalorder %s83, %s86
      %p92 = scmp.eq.s32.totalorder %s26, 0
      %p93 = por %p91, %p92
      %p94 = scmp.ne.s32.totalorder %s83, %s86
      %p95 = scmp.eq.s32.totalorder %s31, 1
      %p96 = por %p94, %p95
      %p97 = scmp.ne.s32.totalorder %s86, %s87
      %p98 = scmp.eq.s32.totalorder %s31, 0
      %p99 = por %p97, %p98
      %p100 = scmp.ne.s32.totalorder %s86, %s87
      %p101 = scmp.eq.s32.totalorder %s32, 1
      %p102 = por %p100, %p101
      %p104 = scmp.ne.s32.totalorder %s87, %s103
      %p105 = scmp.eq.s32.totalorder %s32, 0
      %p106 = por %p104, %p105
      %s107 = ssub.s32 %s26, %s33
      %p108 = scmp.eq.s32.totalorder %s107, 0
      %s110 = sadd.s32 %s109, 1
      %s111 = scalar_select %p108, %s109, %s110
      %p114 = pneg %p108
      %p115 = scmp.eq.s32.totalorder %s26, 1
      %p116 = por %p114, %p115
      %p117 = scmp.ne.s32.totalorder %s109, %s112
      %p118 = scmp.eq.s32.totalorder %s26, 0
      %p119 = por %p117, %p118
      %p120 = scmp.ne.s32.totalorder %s109, %s112
      %p121 = scmp.eq.s32.totalorder %s31, 1
      %p122 = por %p120, %p121
      %p123 = scmp.ne.s32.totalorder %s112, %s113
      %p124 = scmp.eq.s32.totalorder %s31, 0
      %p125 = por %p123, %p124
      %p126 = scmp.ne.s32.totalorder %s112, %s113
      %p127 = scmp.eq.s32.totalorder %s32, 1
      %p128 = por %p126, %p127
      %p130 = scmp.ne.s32.totalorder %s113, %s129
      %p131 = scmp.eq.s32.totalorder %s32, 0
      %p132 = por %p130, %p131
      %s133 = ssub.s32 %s26, %s33
      %p134 = scmp.eq.s32.totalorder %s133, 0
      %s136 = sadd.s32 %s135, 1
      %s137 = scalar_select %p134, %s135, %s136
      %p140 = pneg %p134
      %p141 = scmp.eq.s32.totalorder %s26, 1
      %p142 = por %p140, %p141
      %p143 = scmp.ne.s32.totalorder %s135, %s138
      %p144 = scmp.eq.s32.totalorder %s26, 0
      %p145 = por %p143, %p144
      %p146 = scmp.ne.s32.totalorder %s135, %s138
      %p147 = scmp.eq.s32.totalorder %s31, 1
      %p148 = por %p146, %p147
      %p149 = scmp.ne.s32.totalorder %s138, %s139
      %p150 = scmp.eq.s32.totalorder %s31, 0
      %p151 = por %p149, %p150
      %p152 = scmp.ne.s32.totalorder %s138, %s139
      %p153 = scmp.eq.s32.totalorder %s32, 1
      %p154 = por %p152, %p153
      %p156 = scmp.ne.s32.totalorder %s139, %s155
      %p157 = scmp.eq.s32.totalorder %s32, 0
      %p158 = por %p156, %p157
      %s159 = ssub.s32 %s26, %s33
      %p160 = scmp.eq.s32.totalorder %s159, 0
      %s162 = sadd.s32 %s161, 1
      %s163 = scalar_select %p160, %s161, %s162
      %p166 = pneg %p160
      %p167 = scmp.eq.s32.totalorder %s26, 1
      %p168 = por %p166, %p167
      %p169 = scmp.ne.s32.totalorder %s161, %s164
      %p170 = scmp.eq.s32.totalorder %s26, 0
      %p171 = por %p169, %p170
      %p172 = scmp.ne.s32.totalorder %s161, %s164
      %p173 = scmp.eq.s32.totalorder %s31, 1
      %p174 = por %p172, %p173
      %p175 = scmp.ne.s32.totalorder %s164, %s165
      %p176 = scmp.eq.s32.totalorder %s31, 0
      %p177 = por %p175, %p176
      %p178 = scmp.ne.s32.totalorder %s164, %s165
      %p179 = scmp.eq.s32.totalorder %s32, 1
      %p180 = por %p178, %p179
      %p182 = scmp.ne.s32.totalorder %s165, %s181
      %p183 = scmp.eq.s32.totalorder %s32, 0
      %p184 = por %p182, %p183
      %s185 = ssub.s32 %s26, %s33
      %p186 = scmp.eq.s32.totalorder %s185, 0
      %s188 = sadd.s32 %s187, 1
      %s189 = scalar_select %p186, %s187, %s188
      %p192 = pneg %p186
      %p193 = scmp.eq.s32.totalorder %s26, 1
      %p194 = por %p192, %p193
      %p195 = scmp.ne.s32.totalorder %s187, %s190
      %p196 = scmp.eq.s32.totalorder %s26, 0
      %p197 = por %p195, %p196
      %p198 = scmp.ne.s32.totalorder %s187, %s190
      %p199 = scmp.eq.s32.totalorder %s31, 1
      %p200 = por %p198, %p199
      %p201 = scmp.ne.s32.totalorder %s190, %s191
      %p202 = scmp.eq.s32.totalorder %s31, 0
      %p203 = por %p201, %p202
      %p204 = scmp.ne.s32.totalorder %s190, %s191
      %p205 = scmp.eq.s32.totalorder %s32, 1
      %p206 = por %p204, %p205
      %p208 = scmp.ne.s32.totalorder %s191, %s207
      %p209 = scmp.eq.s32.totalorder %s32, 0
      %p210 = por %p208, %p209
      %p211 = scmp.le.s32.totalorder 1, %s26
      %p212 = scmp.lt.s32.totalorder %s26, 3
      %p213 = pnand %p211, %p212
      %p214 = pneg %p213
      // Predicated region
      $region9: #{tpu_custom_call.1} parent=5 // pred_check
        _
      $region10: #{tpu_custom_call.1} parent=5 // pred_check_branch
        %216 = sbr.rel (%p213) target = $region12
      $region11: #{tpu_custom_call.1} parent=5 // pred_region
        %s217 = ssub.s32 %s26, 1
        // Predicated region
        $region13: #{tpu_custom_call.1} parent=11 // pred_check
          %p218 = pneg %p47
        $region14: #{tpu_custom_call.1} parent=11 // pred_check_branch
          %220 = sbr.rel (%p218) target = $region16
        $region15: #{tpu_custom_call.1} parent=11 // pred_region
          %s222 = ssub.s32 128, 128
          %223 = vsyncadd [#allocation4], %s222
          %s225 = sshll.u32 [#allocation3], 4
          %s226 = int_to_ptr.vmem [resolvable:$true] %s225
          %228 = dma.hbm_to_vmem [thread:$0]  %s0, 128, %s226, [#allocation4]
        $region16: #{tpu_custom_call.1} parent=11 // pred_fallthru
          _
      $region12: #{tpu_custom_call.1} parent=5 // pred_fallthru
        _
      %p229 = scmp.lt.s32.totalorder %s26, 2
      // Predicated region
      $region17: #{tpu_custom_call.1} parent=5 // pred_check
        %p230 = pneg %p229
      $region18: #{tpu_custom_call.1} parent=5 // pred_check_branch
        %232 = sbr.rel (%p230) target = $region20
      $region19: #{tpu_custom_call.1} parent=5 // pred_region
        // Predicated region
        $region21: #{tpu_custom_call.1} parent=19 // pred_check
          %p233 = pneg %p67
        $region22: #{tpu_custom_call.1} parent=19 // pred_check_branch
          %235 = sbr.rel (%p233) target = $region24
        $region23: #{tpu_custom_call.1} parent=19 // pred_region
          %s236 = sand.u32 %s26, 1
          %s237 = scalar_lea.sflag [#allocation7], %s236
          %s238 = sand.u32 %s57, 1
          %s239 = smul.addr %s238, 8
          %s240 = scalar_lea.vmem [#allocation6], %s239
          %s242 = ssub.s32 128, 128
          %243 = vsyncadd %s237, %s242
          %s244 = smul.addr %s26, 128
          %s245 = scalar_lea.hbm %s1, %s244
          %s247 = sshll.u32 %s240, 4
          %s248 = int_to_ptr.vmem [resolvable:$true] %s247
          %250 = dma.hbm_to_vmem [thread:$0]  %s245, 128, %s248, %s237
        $region24: #{tpu_custom_call.1} parent=19 // pred_fallthru
          _
        // Predicated region
        $region25: #{tpu_custom_call.1} parent=19 // pred_check
          %p251 = pneg %p93
        $region26: #{tpu_custom_call.1} parent=19 // pred_check_branch
          %253 = sbr.rel (%p251) target = $region28
        $region27: #{tpu_custom_call.1} parent=19 // pred_region
          %s254 = sand.u32 %s26, 1
          %s255 = scalar_lea.sflag [#allocation7], %s254
          %s256 = sand.u32 %s83, 1
          %s257 = smul.addr %s256, 8
          %s258 = scalar_lea.vmem [#allocation8], %s257
          %s260 = ssub.s32 128, 128
          %261 = vsyncadd %s255, %s260
          %s262 = smul.addr %s26, 128
          %s263 = scalar_lea.hbm %s2, %s262
          %s265 = sshll.u32 %s258, 4
          %s266 = int_to_ptr.vmem [resolvable:$true] %s265
          %268 = dma.hbm_to_vmem [thread:$0]  %s263, 128, %s266, %s255
        $region28: #{tpu_custom_call.1} parent=19 // pred_fallthru
          _
        // Predicated region
        $region29: #{tpu_custom_call.1} parent=19 // pred_check
          %p269 = pneg %p119
        $region30: #{tpu_custom_call.1} parent=19 // pred_check_branch
          %271 = sbr.rel (%p269) target = $region32
        $region31: #{tpu_custom_call.1} parent=19 // pred_region
          %s272 = sand.u32 %s109, 1
          %s273 = scalar_lea.sflag [#allocation10], %s272
          %s274 = sand.u32 %s109, 1
          %s275 = smul.addr %s274, 1024
          %s276 = scalar_lea.vmem [#allocation9], %s275
          %s278 = ssub.s32 16384, 16384
          %279 = vsyncadd %s273, %s278
          %s280 = smul.addr %s26, 128
          %s281 = smul.addr %s280, 128
          %s282 = scalar_lea.hbm %s3, %s281
          %s283 = sshll.u32 %s276, 4
          %s284 = int_to_ptr.vmem [resolvable:$true] %s283
          %289 = dma.hbm_to_vmem [thread:$0]  %s282, 16384, %s284, %s273, 512, 512, 32
        $region32: #{tpu_custom_call.1} parent=19 // pred_fallthru
          _
        // Predicated region
        $region33: #{tpu_custom_call.1} parent=19 // pred_check
          %p290 = pneg %p145
        $region34: #{tpu_custom_call.1} parent=19 // pred_check_branch
          %292 = sbr.rel (%p290) target = $region36
        $region35: #{tpu_custom_call.1} parent=19 // pred_region
          %p293 = scmp.lt.s32.totalorder %s26, 1
          %s294 = scalar_select %p293, %s26, 1
          %s295 = smul.addr %s294, 4
          %s296 = scalar_lea.vmem %s4, %s295
        $region36: #{tpu_custom_call.1} parent=19 // pred_fallthru
          _
      $region20: #{tpu_custom_call.1} parent=5 // pred_fallthru
        _
      %p297 = scmp.le.s32.totalorder 1, %s26
      %p298 = scmp.lt.s32.totalorder %s26, 3
      %p299 = pnand %p297, %p298
      %p300 = pneg %p299
      // Predicated region
      $region37: #{tpu_custom_call.1} parent=5 // pred_check
        _
      $region38: #{tpu_custom_call.1} parent=5 // pred_check_branch
        %302 = sbr.rel (%p299) target = $region40
      $region39: #{tpu_custom_call.1} parent=5 // pred_region
        %s303 = ssub.s32 %s26, 1
        // Predicated region
        $region41: #{tpu_custom_call.1} parent=39 // pred_check
          %p304 = pneg %p47
        $region42: #{tpu_custom_call.1} parent=39 // pred_check_branch
          %306 = sbr.rel (%p304) target = $region44
        $region43: #{tpu_custom_call.1} parent=39 // pred_region
          %307 = dma.done [#allocation4], 128
        $region44: #{tpu_custom_call.1} parent=39 // pred_fallthru
          _
        %s308 = sand.u32 %s31, 1
        %s309 = scalar_lea.sflag [#allocation7], %s308
        %s310 = sand.u32 %s60, 1
        %s311 = smul.addr %s310, 8
        %s312 = scalar_lea.vmem [#allocation6], %s311
        // Predicated region
        $region45: #{tpu_custom_call.1} parent=39 // pred_check
          %p313 = pneg %p73
        $region46: #{tpu_custom_call.1} parent=39 // pred_check_branch
          %315 = sbr.rel (%p313) target = $region48
        $region47: #{tpu_custom_call.1} parent=39 // pred_region
          %316 = dma.done %s309, 128
        $region48: #{tpu_custom_call.1} parent=39 // pred_fallthru
          _
        %s317 = sand.u32 %s31, 1
        %s318 = scalar_lea.sflag [#allocation7], %s317
        %s319 = sand.u32 %s86, 1
        %s320 = smul.addr %s319, 8
        %s321 = scalar_lea.vmem [#allocation8], %s320
        // Predicated region
        $region49: #{tpu_custom_call.1} parent=39 // pred_check
          %p322 = pneg %p99
        $region50: #{tpu_custom_call.1} parent=39 // pred_check_branch
          %324 = sbr.rel (%p322) target = $region52
        $region51: #{tpu_custom_call.1} parent=39 // pred_region
          %325 = dma.done %s318, 128
        $region52: #{tpu_custom_call.1} parent=39 // pred_fallthru
          _
        %s326 = sand.u32 %s112, 1
        %s327 = scalar_lea.sflag [#allocation10], %s326
        %s328 = sand.u32 %s112, 1
        %s329 = smul.addr %s328, 1024
        %s330 = scalar_lea.vmem [#allocation9], %s329
        // Predicated region
        $region53: #{tpu_custom_call.1} parent=39 // pred_check
          %p331 = pneg %p125
        $region54: #{tpu_custom_call.1} parent=39 // pred_check_branch
          %333 = sbr.rel (%p331) target = $region56
        $region55: #{tpu_custom_call.1} parent=39 // pred_region
          %334 = dma.done %s327, 16384
        $region56: #{tpu_custom_call.1} parent=39 // pred_fallthru
          _
        %p335 = pneg %p47
        %p336 = pneg %p44
        %s337 = sand.u32 %s31, 1
        %s338 = scalar_lea.sflag [#allocation7], %s337
        %s339 = sand.u32 %s60, 1
        %s340 = smul.addr %s339, 8
        %s341 = scalar_lea.vmem [#allocation6], %s340
        %p342 = pneg %p73
        %p343 = pneg %p70
        %s344 = sand.u32 %s31, 1
        %s345 = scalar_lea.sflag [#allocation7], %s344
        %s346 = sand.u32 %s86, 1
        %s347 = smul.addr %s346, 8
        %s348 = scalar_lea.vmem [#allocation8], %s347
        %p349 = pneg %p99
        %p350 = pneg %p96
        %s351 = sand.u32 %s112, 1
        %s352 = scalar_lea.sflag [#allocation10], %s351
        %s353 = sand.u32 %s112, 1
        %s354 = smul.addr %s353, 1024
        %s355 = scalar_lea.vmem [#allocation9], %s354
        %p356 = pneg %p125
        %p357 = pneg %p122
        %p358 = scmp.lt.s32.totalorder %s31, 1
        %s359 = scalar_select %p358, %s31, 1
        %s360 = smul.addr %s359, 4
        %s361 = scalar_lea.vmem %s4, %s360
        %p362 = pneg %p151
        %p363 = pneg %p148
        %p364 = pneg %p177
        %p365 = pneg %p174
        %s366 = sand.u32 %s164, 1
        %s367 = scalar_lea.sflag [#allocation5], %s366
        %s368 = sand.u32 %s164, 1
        %s369 = smul.addr %s368, 8
        %s370 = scalar_lea.vmem [#allocation11], %s369
        %p371 = pneg %p203
        %p372 = pneg %p200
        %s373 = sand.u32 %s190, 1
        %s374 = scalar_lea.sflag [#allocation13], %s373
        %s375 = sand.u32 %s190, 1
        %s376 = smul.addr %s375, 8
        %s377 = scalar_lea.vmem [#allocation12], %s376
        %p378 = scmp.lt.s32.totalorder %s31, 1
        %s379 = scalar_select %p378, %s31, 1
        %s380 = smul.addr %s379, 4
        %s381 = scalar_lea.vmem %s4, %s380
        %p382 = scmp.eq.s32.totalorder %s31, 0
        // Predicated region
        $region57: #{tpu_custom_call.1} parent=39 // pred_check
          %p383 = pneg %p382
        $region58: #{tpu_custom_call.1} parent=39 // pred_check_branch
          %385 = sbr.rel (%p383) target = $region60
        $region59: #{tpu_custom_call.1} parent=39 // pred_region
          %v386 = vld [vmem:[#allocation3] sm:$0xff]
          %387 = vst [vmem:[#allocation2] sm:$0xff] %v386
        $region60: #{tpu_custom_call.1} parent=39 // pred_fallthru
          _
        %v388 = vld [vmem:[%s312] sm:$0xff]
        %389 = vst [vmem:[#allocation2 + $0x8] sm:$0xff] %v388
        %v390 = vld [vmem:[#allocation2] sm:$0xff]
        %v391 = vld [vmem:[#allocation2 + $0x8] sm:$0xff]
        %v392 = vld [vmem:[%s330] sm:$0xff]
        %v393 = vld [vmem:[%s330 + $0x8] sm:$0xff]
        %v394 = vld [vmem:[%s330 + $0x10] sm:$0xff]
        %v395 = vld [vmem:[%s330 + $0x18] sm:$0xff]
        %v396 = vld [vmem:[%s330 + $0x20] sm:$0xff]
        %v397 = vld [vmem:[%s330 + $0x28] sm:$0xff]
        %v398 = vld [vmem:[%s330 + $0x30] sm:$0xff]
        %v399 = vld [vmem:[%s330 + $0x38] sm:$0xff]
        %v400 = vld [vmem:[%s330 + $0x40] sm:$0xff]
        %v401 = vld [vmem:[%s330 + $0x48] sm:$0xff]
        %v402 = vld [vmem:[%s330 + $0x50] sm:$0xff]
        %v403 = vld [vmem:[%s330 + $0x58] sm:$0xff]
        %v404 = vld [vmem:[%s330 + $0x60] sm:$0xff]
        %v405 = vld [vmem:[%s330 + $0x68] sm:$0xff]
        %v406 = vld [vmem:[%s330 + $0x70] sm:$0xff]
        %v407 = vld [vmem:[%s330 + $0x78] sm:$0xff]
        %v408 = vld [vmem:[%s330 + $0x80] sm:$0xff]
        %v409 = vld [vmem:[%s330 + $0x88] sm:$0xff]
        %v410 = vld [vmem:[%s330 + $0x90] sm:$0xff]
        %v411 = vld [vmem:[%s330 + $0x98] sm:$0xff]
        %v412 = vld [vmem:[%s330 + $0xa0] sm:$0xff]
        %v413 = vld [vmem:[%s330 + $0xa8] sm:$0xff]
        %v414 = vld [vmem:[%s330 + $0xb0] sm:$0xff]
        %v415 = vld [vmem:[%s330 + $0xb8] sm:$0xff]
        %v416 = vld [vmem:[%s330 + $0xc0] sm:$0xff]
        %v417 = vld [vmem:[%s330 + $0xc8] sm:$0xff]
        %v418 = vld [vmem:[%s330 + $0xd0] sm:$0xff]
        %v419 = vld [vmem:[%s330 + $0xd8] sm:$0xff]
        %v420 = vld [vmem:[%s330 + $0xe0] sm:$0xff]
        %v421 = vld [vmem:[%s330 + $0xe8] sm:$0xff]
        %v422 = vld [vmem:[%s330 + $0xf0] sm:$0xff]
        %v423 = vld [vmem:[%s330 + $0xf8] sm:$0xff]
        %v424 = vld [vmem:[%s330 + $0x100] sm:$0xff]
        %v425 = vld [vmem:[%s330 + $0x108] sm:$0xff]
        %v426 = vld [vmem:[%s330 + $0x110] sm:$0xff]
        %v427 = vld [vmem:[%s330 + $0x118] sm:$0xff]
        %v428 = vld [vmem:[%s330 + $0x120] sm:$0xff]
        %v429 = vld [vmem:[%s330 + $0x128] sm:$0xff]
        %v430 = vld [vmem:[%s330 + $0x130] sm:$0xff]
        %v431 = vld [vmem:[%s330 + $0x138] sm:$0xff]
        %v432 = vld [vmem:[%s330 + $0x140] sm:$0xff]
        %v433 = vld [vmem:[%s330 + $0x148] sm:$0xff]
        %v434 = vld [vmem:[%s330 + $0x150] sm:$0xff]
        %v435 = vld [vmem:[%s330 + $0x158] sm:$0xff]
        %v436 = vld [vmem:[%s330 + $0x160] sm:$0xff]
        %v437 = vld [vmem:[%s330 + $0x168] sm:$0xff]
        %v438 = vld [vmem:[%s330 + $0x170] sm:$0xff]
        %v439 = vld [vmem:[%s330 + $0x178] sm:$0xff]
        %v440 = vld [vmem:[%s330 + $0x180] sm:$0xff]
        %v441 = vld [vmem:[%s330 + $0x188] sm:$0xff]
        %v442 = vld [vmem:[%s330 + $0x190] sm:$0xff]
        %v443 = vld [vmem:[%s330 + $0x198] sm:$0xff]
        %v444 = vld [vmem:[%s330 + $0x1a0] sm:$0xff]
        %v445 = vld [vmem:[%s330 + $0x1a8] sm:$0xff]
        %v446 = vld [vmem:[%s330 + $0x1b0] sm:$0xff]
        %v447 = vld [vmem:[%s330 + $0x1b8] sm:$0xff]
        %v448 = vld [vmem:[%s330 + $0x1c0] sm:$0xff]
        %v449 = vld [vmem:[%s330 + $0x1c8] sm:$0xff]
        %v450 = vld [vmem:[%s330 + $0x1d0] sm:$0xff]
        %v451 = vld [vmem:[%s330 + $0x1d8] sm:$0xff]
        %v452 = vld [vmem:[%s330 + $0x1e0] sm:$0xff]
        %v453 = vld [vmem:[%s330 + $0x1e8] sm:$0xff]
        %v454 = vld [vmem:[%s330 + $0x1f0] sm:$0xff]
        %v455 = vld [vmem:[%s330 + $0x1f8] sm:$0xff]
        %v456 = vld [vmem:[%s330 + $0x200] sm:$0xff]
        %v457 = vld [vmem:[%s330 + $0x208] sm:$0xff]
        %v458 = vld [vmem:[%s330 + $0x210] sm:$0xff]
        %v459 = vld [vmem:[%s330 + $0x218] sm:$0xff]
        %v460 = vld [vmem:[%s330 + $0x220] sm:$0xff]
        %v461 = vld [vmem:[%s330 + $0x228] sm:$0xff]
        %v462 = vld [vmem:[%s330 + $0x230] sm:$0xff]
        %v463 = vld [vmem:[%s330 + $0x238] sm:$0xff]
        %v464 = vld [vmem:[%s330 + $0x240] sm:$0xff]
        %v465 = vld [vmem:[%s330 + $0x248] sm:$0xff]
        %v466 = vld [vmem:[%s330 + $0x250] sm:$0xff]
        %v467 = vld [vmem:[%s330 + $0x258] sm:$0xff]
        %v468 = vld [vmem:[%s330 + $0x260] sm:$0xff]
        %v469 = vld [vmem:[%s330 + $0x268] sm:$0xff]
        %v470 = vld [vmem:[%s330 + $0x270] sm:$0xff]
        %v471 = vld [vmem:[%s330 + $0x278] sm:$0xff]
        %v472 = vld [vmem:[%s330 + $0x280] sm:$0xff]
        %v473 = vld [vmem:[%s330 + $0x288] sm:$0xff]
        %v474 = vld [vmem:[%s330 + $0x290] sm:$0xff]
        %v475 = vld [vmem:[%s330 + $0x298] sm:$0xff]
        %v476 = vld [vmem:[%s330 + $0x2a0] sm:$0xff]
        %v477 = vld [vmem:[%s330 + $0x2a8] sm:$0xff]
        %v478 = vld [vmem:[%s330 + $0x2b0] sm:$0xff]
        %v479 = vld [vmem:[%s330 + $0x2b8] sm:$0xff]
        %v480 = vld [vmem:[%s330 + $0x2c0] sm:$0xff]
        %v481 = vld [vmem:[%s330 + $0x2c8] sm:$0xff]
        %v482 = vld [vmem:[%s330 + $0x2d0] sm:$0xff]
        %v483 = vld [vmem:[%s330 + $0x2d8] sm:$0xff]
        %v484 = vld [vmem:[%s330 + $0x2e0] sm:$0xff]
        %v485 = vld [vmem:[%s330 + $0x2e8] sm:$0xff]
        %v486 = vld [vmem:[%s330 + $0x2f0] sm:$0xff]
        %v487 = vld [vmem:[%s330 + $0x2f8] sm:$0xff]
        %v488 = vld [vmem:[%s330 + $0x300] sm:$0xff]
        %v489 = vld [vmem:[%s330 + $0x308] sm:$0xff]
        %v490 = vld [vmem:[%s330 + $0x310] sm:$0xff]
        %v491 = vld [vmem:[%s330 + $0x318] sm:$0xff]
        %v492 = vld [vmem:[%s330 + $0x320] sm:$0xff]
        %v493 = vld [vmem:[%s330 + $0x328] sm:$0xff]
        %v494 = vld [vmem:[%s330 + $0x330] sm:$0xff]
        %v495 = vld [vmem:[%s330 + $0x338] sm:$0xff]
        %v496 = vld [vmem:[%s330 + $0x340] sm:$0xff]
        %v497 = vld [vmem:[%s330 + $0x348] sm:$0xff]
        %v498 = vld [vmem:[%s330 + $0x350] sm:$0xff]
        %v499 = vld [vmem:[%s330 + $0x358] sm:$0xff]
        %v500 = vld [vmem:[%s330 + $0x360] sm:$0xff]
        %v501 = vld [vmem:[%s330 + $0x368] sm:$0xff]
        %v502 = vld [vmem:[%s330 + $0x370] sm:$0xff]
        %v503 = vld [vmem:[%s330 + $0x378] sm:$0xff]
        %v504 = vld [vmem:[%s330 + $0x380] sm:$0xff]
        %v505 = vld [vmem:[%s330 + $0x388] sm:$0xff]
        %v506 = vld [vmem:[%s330 + $0x390] sm:$0xff]
        %v507 = vld [vmem:[%s330 + $0x398] sm:$0xff]
        %v508 = vld [vmem:[%s330 + $0x3a0] sm:$0xff]
        %v509 = vld [vmem:[%s330 + $0x3a8] sm:$0xff]
        %v510 = vld [vmem:[%s330 + $0x3b0] sm:$0xff]
        %v511 = vld [vmem:[%s330 + $0x3b8] sm:$0xff]
        %v512 = vld [vmem:[%s330 + $0x3c0] sm:$0xff]
        %v513 = vld [vmem:[%s330 + $0x3c8] sm:$0xff]
        %v514 = vld [vmem:[%s330 + $0x3d0] sm:$0xff]
        %v515 = vld [vmem:[%s330 + $0x3d8] sm:$0xff]
        %v516 = vld [vmem:[%s330 + $0x3e0] sm:$0xff]
        %v517 = vld [vmem:[%s330 + $0x3e8] sm:$0xff]
        %v518 = vld [vmem:[%s330 + $0x3f0] sm:$0xff]
        %v519 = vld [vmem:[%s330 + $0x3f8] sm:$0xff]
        %v520 = vld [vmem:[%s381] sm:$0xf]
        %v522 = vlaneseq
        %v523 = vshrl.u32 %v522, 7
        %v524 = vsub.s32 0, %v523
        %v525 = vrot.slane %v520, %v524
        %v526 = vlaneseq
        %v527 = vshrl.u32 %v526, 7
        %v528 = vsub.s32 1, %v527
        %v529 = vrot.slane %v520, %v528
        %v530 = vlaneseq
        %v531 = vshrl.u32 %v530, 7
        %v532 = vsub.s32 2, %v531
        %v533 = vrot.slane %v520, %v532
        %v534 = vlaneseq
        %v535 = vshrl.u32 %v534, 7
        %v536 = vsub.s32 3, %v535
        %v537 = vrot.slane %v520, %v536
        %542 = vmatprep.subr.mxu0 %v393
        %543 = vmatpush1.msra.mxu0 %v392
        %544 = vmatprep.subr.mxu0 %v397
        %545 = vmatpush1.msra.mxu0 %v396
        %546 = vmatprep.subr.mxu0 %v401
        %547 = vmatpush1.msra.mxu0 %v400
        %548 = vmatprep.subr.mxu0 %v405
        %549 = vmatpush1.msra.mxu0 %v404
        %550 = vmatprep.subr.mxu0 %v409
        %551 = vmatpush1.msra.mxu0 %v408
        %552 = vmatprep.subr.mxu0 %v413
        %553 = vmatpush1.msra.mxu0 %v412
        %554 = vmatprep.subr.mxu0 %v417
        %555 = vmatpush1.msra.mxu0 %v416
        %556 = vmatprep.subr.mxu0 %v421
        %557 = vmatpush1.msra.mxu0 %v420
        %558 = vmatprep.subr.mxu0 %v425
        %559 = vmatpush1.msra.mxu0 %v424
        %560 = vmatprep.subr.mxu0 %v429
        %561 = vmatpush1.msra.mxu0 %v428
        %562 = vmatprep.subr.mxu0 %v433
        %563 = vmatpush1.msra.mxu0 %v432
        %564 = vmatprep.subr.mxu0 %v437
        %565 = vmatpush1.msra.mxu0 %v436
        %566 = vmatprep.subr.mxu0 %v441
        %567 = vmatpush1.msra.mxu0 %v440
        %568 = vmatprep.subr.mxu0 %v445
        %569 = vmatpush1.msra.mxu0 %v444
        %570 = vmatprep.subr.mxu0 %v449
        %571 = vmatpush1.msra.mxu0 %v448
        %572 = vmatprep.subr.mxu0 %v453
        %573 = vmatpush1.msra.mxu0 %v452
        %574 = vmatprep.subr.mxu0 %v457
        %575 = vmatpush1.msra.mxu0 %v456
        %576 = vmatprep.subr.mxu0 %v461
        %577 = vmatpush1.msra.mxu0 %v460
        %578 = vmatprep.subr.mxu0 %v465
        %579 = vmatpush1.msra.mxu0 %v464
        %580 = vmatprep.subr.mxu0 %v469
        %581 = vmatpush1.msra.mxu0 %v468
        %582 = vmatprep.subr.mxu0 %v473
        %583 = vmatpush1.msra.mxu0 %v472
        %584 = vmatprep.subr.mxu0 %v477
        %585 = vmatpush1.msra.mxu0 %v476
        %586 = vmatprep.subr.mxu0 %v481
        %587 = vmatpush1.msra.mxu0 %v480
        %588 = vmatprep.subr.mxu0 %v485
        %589 = vmatpush1.msra.mxu0 %v484
        %590 = vmatprep.subr.mxu0 %v489
        %591 = vmatpush1.msra.mxu0 %v488
        %592 = vmatprep.subr.mxu0 %v493
        %593 = vmatpush1.msra.mxu0 %v492
        %594 = vmatprep.subr.mxu0 %v497
        %595 = vmatpush1.msra.mxu0 %v496
        %596 = vmatprep.subr.mxu0 %v501
        %597 = vmatpush1.msra.mxu0 %v500
        %598 = vmatprep.subr.mxu0 %v505
        %599 = vmatpush1.msra.mxu0 %v504
        %600 = vmatprep.subr.mxu0 %v509
        %601 = vmatpush1.msra.mxu0 %v508
        %602 = vmatprep.subr.mxu0 %v513
        %603 = vmatpush1.msra.mxu0 %v512
        %604 = vmatprep.subr.mxu0 %v517
        %605 = vmatpush1.msra.mxu0 %v516
        %606 = vmatprep.mubr.f32.mxu0 %v391
        %607 = vmatmul.mubr.f32.gmra.mrb[0].mxu0 %v390
        %v608 = vpop.f32.mrb[0].mxu0
        %v609 = vadd.f32 %v525, %v608
        %v610 = vpop.f32.mrb[0].mxu0
        %v611 = vadd.f32 %v529, %v610
        %612 = vdwg.mxu0
        %613 = vmatprep.subr.mxu0 %v395
        %614 = vmatpush1.msra.mxu0 %v394
        %615 = vmatprep.subr.mxu0 %v399
        %616 = vmatpush1.msra.mxu0 %v398
        %617 = vmatprep.subr.mxu0 %v403
        %618 = vmatpush1.msra.mxu0 %v402
        %619 = vmatprep.subr.mxu0 %v407
        %620 = vmatpush1.msra.mxu0 %v406
        %621 = vmatprep.subr.mxu0 %v411
        %622 = vmatpush1.msra.mxu0 %v410
        %623 = vmatprep.subr.mxu0 %v415
        %624 = vmatpush1.msra.mxu0 %v414
        %625 = vmatprep.subr.mxu0 %v419
        %626 = vmatpush1.msra.mxu0 %v418
        %627 = vmatprep.subr.mxu0 %v423
        %628 = vmatpush1.msra.mxu0 %v422
        %629 = vmatprep.subr.mxu0 %v427
        %630 = vmatpush1.msra.mxu0 %v426
        %631 = vmatprep.subr.mxu0 %v431
        %632 = vmatpush1.msra.mxu0 %v430
        %633 = vmatprep.subr.mxu0 %v435
        %634 = vmatpush1.msra.mxu0 %v434
        %635 = vmatprep.subr.mxu0 %v439
        %636 = vmatpush1.msra.mxu0 %v438
        %637 = vmatprep.subr.mxu0 %v443
        %638 = vmatpush1.msra.mxu0 %v442
        %639 = vmatprep.subr.mxu0 %v447
        %640 = vmatpush1.msra.mxu0 %v446
        %641 = vmatprep.subr.mxu0 %v451
        %642 = vmatpush1.msra.mxu0 %v450
        %643 = vmatprep.subr.mxu0 %v455
        %644 = vmatpush1.msra.mxu0 %v454
        %645 = vmatprep.subr.mxu0 %v459
        %646 = vmatpush1.msra.mxu0 %v458
        %647 = vmatprep.subr.mxu0 %v463
        %648 = vmatpush1.msra.mxu0 %v462
        %649 = vmatprep.subr.mxu0 %v467
        %650 = vmatpush1.msra.mxu0 %v466
        %651 = vmatprep.subr.mxu0 %v471
        %652 = vmatpush1.msra.mxu0 %v470
        %653 = vmatprep.subr.mxu0 %v475
        %654 = vmatpush1.msra.mxu0 %v474
        %655 = vmatprep.subr.mxu0 %v479
        %656 = vmatpush1.msra.mxu0 %v478
        %657 = vmatprep.subr.mxu0 %v483
        %658 = vmatpush1.msra.mxu0 %v482
        %659 = vmatprep.subr.mxu0 %v487
        %660 = vmatpush1.msra.mxu0 %v486
        %661 = vmatprep.subr.mxu0 %v491
        %662 = vmatpush1.msra.mxu0 %v490
        %663 = vmatprep.subr.mxu0 %v495
        %664 = vmatpush1.msra.mxu0 %v494
        %665 = vmatprep.subr.mxu0 %v499
        %666 = vmatpush1.msra.mxu0 %v498
        %667 = vmatprep.subr.mxu0 %v503
        %668 = vmatpush1.msra.mxu0 %v502
        %669 = vmatprep.subr.mxu0 %v507
        %670 = vmatpush1.msra.mxu0 %v506
        %671 = vmatprep.subr.mxu0 %v511
        %672 = vmatpush1.msra.mxu0 %v510
        %673 = vmatprep.subr.mxu0 %v515
        %674 = vmatpush1.msra.mxu0 %v514
        %675 = vmatprep.subr.mxu0 %v519
        %676 = vmatpush1.msra.mxu0 %v518
        %677 = vmatprep.mubr.f32.mxu0 %v391
        %678 = vmatmul.mubr.f32.gmra.mrb[0].mxu0 %v390
        %v679 = vpop.f32.mrb[0].mxu0
        %v680 = vadd.f32 %v533, %v679
        %v681 = vpop.f32.mrb[0].mxu0
        %v682 = vadd.f32 %v537, %v681
        %683 = vdwg.mxu0
        %v684 = vxor.u32 %v609, 2147483648
        %v685 = vmul.f32 %v684, 1.442695
        %v686 = vpow.pop %v685
        %v687 = vadd.f32 %v686, 1.0
        %v688 = vrcp.pop %v687
        %v689 = vmul.f32 1.0, %v688
        %v690 = vxor.u32 %v611, 2147483648
        %v691 = vmul.f32 %v690, 1.442695
        %v692 = vpow.pop %v691
        %v693 = vadd.f32 %v692, 1.0
        %v694 = vrcp.pop %v693
        %v695 = vmul.f32 1.0, %v694
        %v696 = vtanh.pop %v680
        %v697 = vxor.u32 %v682, 2147483648
        %v698 = vmul.f32 %v697, 1.442695
        %v699 = vpow.pop %v698
        %v700 = vadd.f32 %v699, 1.0
        %v701 = vrcp.pop %v700
        %v702 = vmul.f32 1.0, %v701
        %v703 = vld [vmem:[%s321] sm:$0xff]
        %v704 = vmul.f32 %v695, %v703
        %v705 = vmul.f32 %v689, %v696
        %v706 = vadd.f32 %v704, %v705
        %v707 = vtanh.pop %v706
        %v708 = vmul.f32 %v702, %v707
        %709 = vst [vmem:[%s370] sm:$0xff] %v708
        %710 = vst [vmem:[%s377] sm:$0xff] %v706
        %s711 = sadd.s32 %s31, 1
        %p712 = scmp.lt.s32.totalorder %s711, 2
        // Predicated region
        $region61: #{tpu_custom_call.1} parent=39 // pred_check
          %p713 = pneg %p712
        $region62: #{tpu_custom_call.1} parent=39 // pred_check_branch
          %715 = sbr.rel (%p713) target = $region64
        $region63: #{tpu_custom_call.1} parent=39 // pred_region
          %716 = vst [vmem:[#allocation2] sm:$0xff] %v708
        $region64: #{tpu_custom_call.1} parent=39 // pred_fallthru
          _
        %s717 = sand.u32 %s164, 1
        %s718 = scalar_lea.sflag [#allocation5], %s717
        %s719 = sand.u32 %s164, 1
        %s720 = smul.addr %s719, 8
        %s721 = scalar_lea.vmem [#allocation11], %s720
        %s722 = sand.u32 %s190, 1
        %s723 = scalar_lea.sflag [#allocation13], %s722
        %s724 = sand.u32 %s190, 1
        %s725 = smul.addr %s724, 8
        %s726 = scalar_lea.vmem [#allocation12], %s725
        // Predicated region
        $region65: #{tpu_custom_call.1} parent=39 // pred_check
          %p727 = pneg %p174
        $region66: #{tpu_custom_call.1} parent=39 // pred_check_branch
          %729 = sbr.rel (%p727) target = $region68
        $region67: #{tpu_custom_call.1} parent=39 // pred_region
          %s731 = ssub.s32 128, 128
          %732 = vsyncadd %s718, %s731
          %s733 = smul.addr %s31, 128
          %s734 = scalar_lea.hbm %s5, %s733
          %s736 = sshll.u32 %s721, 4
          %s737 = int_to_ptr.vmem [resolvable:$true] %s736
          %739 = dma.vmem_to_hbm [thread:$0]  %s737, 128, %s734, %s718
        $region68: #{tpu_custom_call.1} parent=39 // pred_fallthru
          _
        // Predicated region
        $region69: #{tpu_custom_call.1} parent=39 // pred_check
          %p740 = pneg %p200
        $region70: #{tpu_custom_call.1} parent=39 // pred_check_branch
          %742 = sbr.rel (%p740) target = $region72
        $region71: #{tpu_custom_call.1} parent=39 // pred_region
          %s744 = ssub.s32 128, 128
          %745 = vsyncadd %s723, %s744
          %s746 = smul.addr %s31, 128
          %s747 = scalar_lea.hbm %s6, %s746
          %s749 = sshll.u32 %s726, 4
          %s750 = int_to_ptr.vmem [resolvable:$true] %s749
          %752 = dma.vmem_to_hbm [thread:$0]  %s750, 128, %s747, %s723
        $region72: #{tpu_custom_call.1} parent=39 // pred_fallthru
          _
      $region40: #{tpu_custom_call.1} parent=5 // pred_fallthru
        _
      %p753 = scmp.le.s32.totalorder 2, %s26
      // Predicated region
      $region73: #{tpu_custom_call.1} parent=5 // pred_check
        %p754 = pneg %p753
      $region74: #{tpu_custom_call.1} parent=5 // pred_check_branch
        %756 = sbr.rel (%p754) target = $region76
      $region75: #{tpu_custom_call.1} parent=5 // pred_region
        %s757 = ssub.s32 %s26, 2
        // Predicated region
        $region77: #{tpu_custom_call.1} parent=75 // pred_check
          %p758 = pneg %p180
        $region78: #{tpu_custom_call.1} parent=75 // pred_check_branch
          %760 = sbr.rel (%p758) target = $region80
        $region79: #{tpu_custom_call.1} parent=75 // pred_region
          %s761 = sand.u32 %s165, 1
          %s762 = scalar_lea.sflag [#allocation5], %s761
          %s763 = sand.u32 %s165, 1
          %s764 = smul.addr %s763, 8
          %s765 = scalar_lea.vmem [#allocation11], %s764
          %766 = dma.done %s762, 128
        $region80: #{tpu_custom_call.1} parent=75 // pred_fallthru
          _
        // Predicated region
        $region81: #{tpu_custom_call.1} parent=75 // pred_check
          %p767 = pneg %p206
        $region82: #{tpu_custom_call.1} parent=75 // pred_check_branch
          %769 = sbr.rel (%p767) target = $region84
        $region83: #{tpu_custom_call.1} parent=75 // pred_region
          %s770 = sand.u32 %s191, 1
          %s771 = scalar_lea.sflag [#allocation13], %s770
          %s772 = sand.u32 %s191, 1
          %s773 = smul.addr %s772, 8
          %s774 = scalar_lea.vmem [#allocation12], %s773
          %775 = dma.done %s771, 128
        $region84: #{tpu_custom_call.1} parent=75 // pred_fallthru
          _
      $region76: #{tpu_custom_call.1} parent=5 // pred_fallthru
        _
    $region6: #{tpu_custom_call.1} parent=1 // loop_footer
      %s30 = sadd.s32 1, %s26
    $region7: #{tpu_custom_call.1} parent=1 // loop_footer_branch
      %25 = sbr.rel target = $region3
    $region8: #{tpu_custom_call.1} parent=1 // loop_exit
      _
    %776 = vsyncpa [#allocation4], 1
    %s777 = scalar_lea.sflag [#allocation4], 1
    %778 = vsyncpa %s777, 1
    %779 = vsyncpa [#allocation7], 1
    %s780 = scalar_lea.sflag [#allocation7], 1
    %781 = vsyncpa %s780, 1
    %782 = vsyncpa [#allocation10], 1
    %s783 = scalar_lea.sflag [#allocation10], 1
    %784 = vsyncpa %s783, 1
    %785 = vsyncpa [#allocation5], 1
    %s786 = scalar_lea.sflag [#allocation5], 1
    %787 = vsyncpa %s786, 1
    %788 = vsyncpa [#allocation13], 1
    %s789 = scalar_lea.sflag [#allocation13], 1
    %790 = vsyncpa %s789, 1

</llo_original>
